<compile_context>
chip_gen: v5e
topology: v5e:2x2
jax: 0.10.0
libtpu: 0.0.40
codegen_flags: <defaults>
</compile_context>

<pallas_src>
import jax
import jax.numpy as jnp
from jax.experimental import pallas as pl
from jax.experimental.pallas import tpu as pltpu


def _round_up(x, m):
    return ((x + m - 1) // m) * m


def _iou_sums_kernel(pred_ref, tgt_ref, inter_ref, psum_ref, inter_acc, psum_acc):
    """Accumulate, per row (= one (n,c) pair), across column tiles:
         inter = sum_{hw} sigmoid(pred) * target
         psum  = sum_{hw} sigmoid(pred) + target
    """
    k = pl.program_id(1)  # reduction (H*W) axis -- last grid axis

    @pl.when(k == 0)
    def _():
        inter_acc[...] = jnp.zeros_like(inter_acc)
        psum_acc[...] = jnp.zeros_like(psum_acc)

    cb = pred_ref.shape[1]  # column block width (static, multiple of 128)
    # Static, unrolled stride-add over 128-lane chunks: lane-dense partial sums,
    # no per-step cross-lane reduce, no width-1 accumulator dependency chain.
    for j in range(cb // 128):
        sl = slice(j * 128, (j + 1) * 128)
        p = jax.nn.sigmoid(pred_ref[:, sl].astype(jnp.float32))
        t = tgt_ref[:, sl].astype(jnp.float32)
        inter_acc[...] += p * t
        psum_acc[...] += p + t

    @pl.when(k == pl.num_programs(1) - 1)
    def _():
        # Single cross-lane reduce per row tile, only at flush time.
        inter_ref[...] = jnp.sum(inter_acc[...], axis=-1, keepdims=True)
        psum_ref[...] = jnp.sum(psum_acc[...], axis=-1, keepdims=True)


def iou_loss(pred, target, *, row_block=256, col_block=2048):
    """Equivalent of IOU.forward(pred, target) for NCHW inputs."""
    N, C, H, W = pred.shape
    rows = N * C
    cols = H * W

    p2 = pred.reshape(rows, cols)
    t2 = target.reshape(rows, cols)

    # Clamp block sizes for small inputs; keep hardware alignment
    # (row block multiple of 8 sublanes, col block multiple of 128 lanes).
    rb = min(row_block, _round_up(rows, 8))
    cb = min(col_block, _round_up(cols, 128))
    rows_p = _round_up(rows, rb)
    cols_p = _round_up(cols, cb)
    assert cb % 128 == 0 and rb % 8 == 0

    if rows_p != rows or cols_p != cols:
        # sigmoid(-1e30) == 0 in f32, so padded elements add 0 to inter and psum.
        p2 = jnp.pad(
            p2,
            ((0, rows_p - rows), (0, cols_p - cols)),
            constant_values=jnp.asarray(-1e30, dtype=p2.dtype),
        )
        t2 = jnp.pad(t2, ((0, rows_p - rows), (0, cols_p - cols)))

    grid = (rows_p // rb, cols_p // cb)

    inter, psum = pl.pallas_call(
        _iou_sums_kernel,
        out_shape=(
            jax.ShapeDtypeStruct((rows_p, 1), jnp.float32),
            jax.ShapeDtypeStruct((rows_p, 1), jnp.float32),
        ),
        grid_spec=pltpu.PrefetchScalarGridSpec(
            num_scalar_prefetch=0,
            grid=grid,
            in_specs=[
                pl.BlockSpec((rb, cb), lambda i, k: (i, k)),
                pl.BlockSpec((rb, cb), lambda i, k: (i, k)),
            ],
            out_specs=[
                pl.BlockSpec((rb, 1), lambda i, k: (i, 0)),
                pl.BlockSpec((rb, 1), lambda i, k: (i, 0)),
            ],
            scratch_shapes=[
                pltpu.VMEM((rb, 128), jnp.float32),
                pltpu.VMEM((rb, 128), jnp.float32),
            ],
        ),
        compiler_params=pltpu.CompilerParams(
            # Row tiles are independent (megacore-shardable on v7x);
            # the H*W axis is the sequential reduction.
            dimension_semantics=("parallel", "arbitrary"),
        ),
    )(p2, t2)

    inter = inter[:rows, 0]
    union = psum[:rows, 0] - inter      # union = sum(p + t) - inter
    iou = 1.0 - inter / union           # per-(n, c) loss
    return jnp.mean(iou)                # mean over all (n, c)


def _iou_loss_ref(pred, target):
    """Pure-JAX reference matching the PyTorch module."""
    p = jax.nn.sigmoid(pred)
    inter = jnp.sum(p * target, axis=(2, 3))
    union = jnp.sum(p + target, axis=(2, 3)) - inter
    return jnp.mean(1.0 - inter / union)


if __name__ == "__main__":
    key = jax.random.PRNGKey(0)
    k1, k2 = jax.random.split(key)
    # Small shapes consistent with the module: N=2, C=4, H=W=16
    pred = jax.random.normal(k1, (2, 4, 16, 16), dtype=jnp.float32)
    # Binary-ish target mask (like a segmentation target)
    target = (jax.random.uniform(k2, (2, 4, 16, 16)) > 0.5).astype(jnp.float32)

    loss = jax.block_until_ready(iou_loss(pred, target))
    ref = jax.block_until_ready(_iou_loss_ref(pred, target))

    assert jnp.allclose(loss, ref, atol=1e-5, rtol=1e-5), (loss, ref)
    print("KERNEL_OK")
</pallas_src>

<mosaic_0001>
module attributes {stable_mosaic.version = 11 : i64} {
  func.func @_iou_sums_kernel(%arg0: i32, %arg1: i32, %arg2: memref<8x256xf32, #tpu.memory_space<vmem>>, %arg3: memref<8x256xf32, #tpu.memory_space<vmem>>, %arg4: memref<8x1xf32, #tpu.memory_space<vmem>>, %arg5: memref<8x1xf32, #tpu.memory_space<vmem>>, %arg6: memref<8x128xf32, #tpu.memory_space<vmem>>, %arg7: memref<8x128xf32, #tpu.memory_space<vmem>>) attributes {dimension_semantics = [#tpu.dimension_semantics<parallel>, #tpu.dimension_semantics<arbitrary>], iteration_bounds = array<i64: 1, 1>, scalar_prefetch = 0 : i64, scratch_operands = 2 : i64, tpu.core_type = #tpu.core_type<tc>, window_params = [{transform_indices = @transform_0, window_bounds = array<i64: 8, 256>}, {transform_indices = @transform_1, window_bounds = array<i64: 8, 256>}, {transform_indices = @transform_2, window_bounds = array<i64: 8, 1>}, {transform_indices = @transform_3, window_bounds = array<i64: 8, 1>}]} {
    %c0_i32 = arith.constant 0 : i32
    %0 = arith.cmpi eq, %arg1, %c0_i32 : i32
    %1 = arith.extui %0 : i1 to i32
    %c0_i32_0 = arith.constant 0 : i32
    %2 = arith.cmpi ne, %1, %c0_i32_0 : i32
    scf.if %2 {
      %cst_26 = arith.constant 0.000000e+00 : f32
      %36 = vector.broadcast %cst_26 : f32 to vector<8x128xf32>
      %c0_27 = arith.constant 0 : index
      %c0_28 = arith.constant 0 : index
      %37 = vector.load %arg6[%c0_27, %c0_28] : memref<8x128xf32, #tpu.memory_space<vmem>>, vector<8x128xf32>
      tpu.vector_store %arg6[%c0_27, %c0_28], %36 {strides = array<i32>} : memref<8x128xf32, #tpu.memory_space<vmem>>, vector<8x128xf32>,
      %cst_29 = arith.constant 0.000000e+00 : f32
      %38 = vector.broadcast %cst_29 : f32 to vector<8x128xf32>
      %c0_30 = arith.constant 0 : index
      %c0_31 = arith.constant 0 : index
      %39 = vector.load %arg7[%c0_30, %c0_31] : memref<8x128xf32, #tpu.memory_space<vmem>>, vector<8x128xf32>
      tpu.vector_store %arg7[%c0_30, %c0_31], %38 {strides = array<i32>} : memref<8x128xf32, #tpu.memory_space<vmem>>, vector<8x128xf32>,
    } else {
    }
    %c0 = arith.constant 0 : index
    %c0_1 = arith.constant 0 : index
    %3 = vector.load %arg2[%c0, %c0_1] : memref<8x256xf32, #tpu.memory_space<vmem>>, vector<8x128xf32>
    %4 = arith.negf %3 : vector<8x128xf32>
    %5 = math.exp %4 : vector<8x128xf32>
    %cst = arith.constant 1.000000e+00 : f32
    %6 = vector.broadcast %cst : f32 to vector<8x128xf32>
    %7 = arith.addf %6, %5 : vector<8x128xf32>
    %8 = arith.divf %6, %7 : vector<8x128xf32>
    %c0_2 = arith.constant 0 : index
    %c0_3 = arith.constant 0 : index
    %9 = vector.load %arg3[%c0_2, %c0_3] : memref<8x256xf32, #tpu.memory_space<vmem>>, vector<8x128xf32>
    %c0_4 = arith.constant 0 : index
    %c0_5 = arith.constant 0 : index
    %10 = vector.load %arg6[%c0_4, %c0_5] : memref<8x128xf32, #tpu.memory_space<vmem>>, vector<8x128xf32>
    %11 = arith.mulf %8, %9 : vector<8x128xf32>
    %12 = arith.addf %10, %11 : vector<8x128xf32>
    %c0_6 = arith.constant 0 : index
    %c0_7 = arith.constant 0 : index
    %13 = vector.load %arg6[%c0_6, %c0_7] : memref<8x128xf32, #tpu.memory_space<vmem>>, vector<8x128xf32>
    tpu.vector_store %arg6[%c0_6, %c0_7], %12 {strides = array<i32>} : memref<8x128xf32, #tpu.memory_space<vmem>>, vector<8x128xf32>,
    %c0_8 = arith.constant 0 : index
    %c0_9 = arith.constant 0 : index
    %14 = vector.load %arg7[%c0_8, %c0_9] : memref<8x128xf32, #tpu.memory_space<vmem>>, vector<8x128xf32>
    %15 = arith.addf %8, %9 : vector<8x128xf32>
    %16 = arith.addf %14, %15 : vector<8x128xf32>
    %c0_10 = arith.constant 0 : index
    %c0_11 = arith.constant 0 : index
    %17 = vector.load %arg7[%c0_10, %c0_11] : memref<8x128xf32, #tpu.memory_space<vmem>>, vector<8x128xf32>
    tpu.vector_store %arg7[%c0_10, %c0_11], %16 {strides = array<i32>} : memref<8x128xf32, #tpu.memory_space<vmem>>, vector<8x128xf32>,
    %c0_12 = arith.constant 0 : index
    %c128 = arith.constant 128 : index
    %18 = vector.load %arg2[%c0_12, %c128] : memref<8x256xf32, #tpu.memory_space<vmem>>, vector<8x128xf32>
    %19 = arith.negf %18 : vector<8x128xf32>
    %20 = math.exp %19 : vector<8x128xf32>
    %cst_13 = arith.constant 1.000000e+00 : f32
    %21 = vector.broadcast %cst_13 : f32 to vector<8x128xf32>
    %22 = arith.addf %21, %20 : vector<8x128xf32>
    %23 = arith.divf %21, %22 : vector<8x128xf32>
    %c0_14 = arith.constant 0 : index
    %c128_15 = arith.constant 128 : index
    %24 = vector.load %arg3[%c0_14, %c128_15] : memref<8x256xf32, #tpu.memory_space<vmem>>, vector<8x128xf32>
    %c0_16 = arith.constant 0 : index
    %c0_17 = arith.constant 0 : index
    %25 = vector.load %arg6[%c0_16, %c0_17] : memref<8x128xf32, #tpu.memory_space<vmem>>, vector<8x128xf32>
    %26 = arith.mulf %23, %24 : vector<8x128xf32>
    %27 = arith.addf %25, %26 : vector<8x128xf32>
    %c0_18 = arith.constant 0 : index
    %c0_19 = arith.constant 0 : index
    %28 = vector.load %arg6[%c0_18, %c0_19] : memref<8x128xf32, #tpu.memory_space<vmem>>, vector<8x128xf32>
    tpu.vector_store %arg6[%c0_18, %c0_19], %27 {strides = array<i32>} : memref<8x128xf32, #tpu.memory_space<vmem>>, vector<8x128xf32>,
    %c0_20 = arith.constant 0 : index
    %c0_21 = arith.constant 0 : index
    %29 = vector.load %arg7[%c0_20, %c0_21] : memref<8x128xf32, #tpu.memory_space<vmem>>, vector<8x128xf32>
    %30 = arith.addf %23, %24 : vector<8x128xf32>
    %31 = arith.addf %29, %30 : vector<8x128xf32>
    %c0_22 = arith.constant 0 : index
    %c0_23 = arith.constant 0 : index
    %32 = vector.load %arg7[%c0_22, %c0_23] : memref<8x128xf32, #tpu.memory_space<vmem>>, vector<8x128xf32>
    tpu.vector_store %arg7[%c0_22, %c0_23], %31 {strides = array<i32>} : memref<8x128xf32, #tpu.memory_space<vmem>>, vector<8x128xf32>,
    %c0_i32_24 = arith.constant 0 : i32
    %33 = arith.cmpi eq, %arg1, %c0_i32_24 : i32
    %34 = arith.extui %33 : i1 to i32
    %c0_i32_25 = arith.constant 0 : i32
    %35 = arith.cmpi ne, %34, %c0_i32_25 : i32
    scf.if %35 {
      %c0_26 = arith.constant 0 : index
      %c0_27 = arith.constant 0 : index
      %36 = vector.load %arg6[%c0_26, %c0_27] : memref<8x128xf32, #tpu.memory_space<vmem>>, vector<8x128xf32>
      %cst_28 = arith.constant dense<0.000000e+00> : vector<8xf32>
      %37 = vector.multi_reduction <add>, %36, %cst_28 [1] : vector<8x128xf32> to vector<8xf32>
      %38 = vector.shape_cast %37 : vector<8xf32> to vector<8x1xf32>
      %c0_29 = arith.constant 0 : index
      %c0_30 = arith.constant 0 : index
      %39 = vector.load %arg4[%c0_29, %c0_30] : memref<8x1xf32, #tpu.memory_space<vmem>>, vector<8x1xf32>
      tpu.vector_store %arg4[%c0_29, %c0_30], %38 {strides = array<i32>} : memref<8x1xf32, #tpu.memory_space<vmem>>, vector<8x1xf32>,
      %c0_31 = arith.constant 0 : index
      %c0_32 = arith.constant 0 : index
      %40 = vector.load %arg7[%c0_31, %c0_32] : memref<8x128xf32, #tpu.memory_space<vmem>>, vector<8x128xf32>
      %cst_33 = arith.constant dense<0.000000e+00> : vector<8xf32>
      %41 = vector.multi_reduction <add>, %40, %cst_33 [1] : vector<8x128xf32> to vector<8xf32>
      %42 = vector.shape_cast %41 : vector<8xf32> to vector<8x1xf32>
      %c0_34 = arith.constant 0 : index
      %c0_35 = arith.constant 0 : index
      %43 = vector.load %arg5[%c0_34, %c0_35] : memref<8x1xf32, #tpu.memory_space<vmem>>, vector<8x1xf32>
      tpu.vector_store %arg5[%c0_34, %c0_35], %42 {strides = array<i32>} : memref<8x1xf32, #tpu.memory_space<vmem>>, vector<8x1xf32>,
    } else {
    }
    return
  }
  func.func @transform_0(%arg0: i32, %arg1: i32) -> (i32, i32) {
    %c0_i32 = arith.constant 0 : i32
    return %arg0, %arg1 : i32, i32
  }
  func.func @transform_1(%arg0: i32, %arg1: i32) -> (i32, i32) {
    %c0_i32 = arith.constant 0 : i32
    return %arg0, %arg1 : i32, i32
  }
  func.func @transform_2(%arg0: i32, %arg1: i32) -> (i32, i32) {
    %c0_i32 = arith.constant 0 : i32
    %c0_i32_0 = arith.constant 0 : i32
    return %arg0, %c0_i32 : i32, i32
  }
  func.func @transform_3(%arg0: i32, %arg1: i32) -> (i32, i32) {
    %c0_i32 = arith.constant 0 : i32
    %c0_i32_0 = arith.constant 0 : i32
    return %arg0, %c0_i32 : i32, i32
  }
}

</mosaic_0001>

<llo_original>
// kernel: tpu_custom_call.1
$region0: #{tpu_custom_call.1}
  #allocation0 [shape = 'u32[]', space=smem, size = 0x4, offset = 0x4, fixed_abs, tag = 'smem constant byte address 0x4 - core index']
  #allocation1 [shape = 'u32[72,128]{1,0:T(1,128)}', space=vmem, size = 0x9000, scoped, tag = 'internal scratch']
  #allocation2 [shape = 'f32[8,128]{1,0:T(8,128)}', space=vmem, size = 0x1000, scoped, tag = 'scratch operand']
  #allocation3 [shape = 'f32[8,128]{1,0:T(8,128)}', space=vmem, size = 0x1000, scoped, tag = 'scratch operand']
  %s0 = inlined_call_operand.hbm [shape: f32[8,256], index: 0, kind: input, shape index: {}]
  %s1 = inlined_call_operand.hbm [shape: f32[8,256], index: 1, kind: input, shape index: {}]
  %s2 = inlined_call_operand.vmem [shape: f32[8,1], index: 2, kind: output, shape index: {0}]
  %s3 = inlined_call_operand.vmem [shape: f32[8,1], index: 3, kind: output, shape index: {1}]
  %4 = xla_tuple %s2, %s3
  %s5 = sld [smem:[#allocation0]]
  $region42: #{tpu_custom_call.1} parent=0
    _
  %s7 = ssub.s32 1, %s5
  %s8 = scalar_select 0, %s7, %s5
  $region1: #{tpu_custom_call.1} parent=0
    #allocation4 [shape = 'u8[8192]{0}', space=vmem, size = 0x2000, scoped, tag = 'input window, operand 0, single buffered']
    #allocation5 [shape = 's32[1]{0}', space=sflag, size = 0x4, scoped, tag = 'scoped memory for tpu_custom_call.1']
    #allocation6 [shape = 'u8[8192]{0}', space=vmem, size = 0x2000, scoped, tag = 'input window, operand 1, single buffered']
    #allocation7 [shape = 's32[1]{0}', space=sflag, size = 0x4, scoped, tag = 'scoped memory for tpu_custom_call.1']
    %9 = vsyncpa [#allocation5], 0
    %10 = vsyncpa [#allocation7], 0
    // Predicated region
    $region2: #{tpu_custom_call.1} parent=1 // pred_check
      _
    $region3: #{tpu_custom_call.1} parent=1 // pred_check_branch
      %12 = sbr.rel (0) target = $region5
    $region4: #{tpu_custom_call.1} parent=1 // pred_region
      %14 = vsyncadd [#allocation5], 0
      %s16 = sshll.u32 %s0, 4
      %s17 = int_to_ptr.hbm [resolvable:$true] %s16
      %s18 = sshll.u32 [#allocation4], 4
      %s19 = int_to_ptr.vmem [resolvable:$true] %s18
      %21 = dma.hbm_to_vmem [thread:$0]  %s17, 256, %s19, [#allocation5]
    $region5: #{tpu_custom_call.1} parent=1 // pred_fallthru
      _
    // Predicated region
    $region6: #{tpu_custom_call.1} parent=1 // pred_check
      _
    $region7: #{tpu_custom_call.1} parent=1 // pred_check_branch
      %23 = sbr.rel (0) target = $region9
    $region8: #{tpu_custom_call.1} parent=1 // pred_region
      %25 = vsyncadd [#allocation7], 0
      %s27 = sshll.u32 %s1, 4
      %s28 = int_to_ptr.hbm [resolvable:$true] %s27
      %s29 = sshll.u32 [#allocation6], 4
      %s30 = int_to_ptr.vmem [resolvable:$true] %s29
      %32 = dma.hbm_to_vmem [thread:$0]  %s28, 256, %s30, [#allocation7]
    $region9: #{tpu_custom_call.1} parent=1 // pred_fallthru
      _
    // Predicated region
    $region10: #{tpu_custom_call.1} parent=1 // pred_check
      _
    $region11: #{tpu_custom_call.1} parent=1 // pred_check_branch
      %34 = sbr.rel (0) target = $region13
    $region12: #{tpu_custom_call.1} parent=1 // pred_region
      %36 = dma.done [#allocation5], 256
    $region13: #{tpu_custom_call.1} parent=1 // pred_fallthru
      _
    // Predicated region
    $region14: #{tpu_custom_call.1} parent=1 // pred_check
      _
    $region15: #{tpu_custom_call.1} parent=1 // pred_check_branch
      %38 = sbr.rel (0) target = $region17
    $region16: #{tpu_custom_call.1} parent=1 // pred_region
      %40 = dma.done [#allocation7], 256
    $region17: #{tpu_custom_call.1} parent=1 // pred_fallthru
      _
    %p41 = scmp.eq.s32.totalorder 0, 0
    // Predicated region
    $region18: #{tpu_custom_call.1} parent=1 // pred_check
      %p42 = pneg %p41
    $region19: #{tpu_custom_call.1} parent=1 // pred_check_branch
      %44 = sbr.rel (%p42) target = $region21
    $region20: #{tpu_custom_call.1} parent=1 // pred_region
      %45 = vst [vmem:[#allocation2] sm:$0xff] 0.0
      %46 = vst [vmem:[#allocation3] sm:$0xff] 0.0
    $region21: #{tpu_custom_call.1} parent=1 // pred_fallthru
      _
    %v47 = vld [vmem:[#allocation4] sm:$0xff]
    %v48 = vxor.u32 %v47, 2147483648
    %v49 = vmul.f32 %v48, 1.442695
    %v50 = vpow.pop %v49
    %v51 = vadd.f32 %v50, 1.0
    %v52 = vrcp.pop %v51
    %v53 = vmul.f32 %v51, %v52
    %v54 = vsub.f32 1.0, %v53
    %v55 = vmul.f32 %v52, %v54
    %v56 = vadd.f32 %v52, %v55
    %vm57 = vweird.f32 %v51
    %vm58 = vweird.f32 %v52
    %vm59 = vmor %vm57, %vm58
    %v60 = vsel %vm59, %v52, %v56
    %v61 = vand.u32 2147483647, %v51
    %vm62 = vcmp.eq.f32.partialorder %v61, 8.507059e+37
    %v63 = vand.u32 %v51, 2147483648
    %v64 = vor.u32 1.1754944e-38, %v63
    %v65 = vsel %vm62, %v64, %v60
    %v66 = vmul.f32 1.0, %v65
    %v67 = vld [vmem:[#allocation6] sm:$0xff]
    %v68 = vld [vmem:[#allocation2] sm:$0xff]
    %v69 = vmul.f32 %v66, %v67
    %v70 = vadd.f32 %v68, %v69
    %71 = vst [vmem:[#allocation2] sm:$0xff] %v70
    %v72 = vld [vmem:[#allocation3] sm:$0xff]
    %v73 = vadd.f32 %v66, %v67
    %v74 = vadd.f32 %v72, %v73
    %75 = vst [vmem:[#allocation3] sm:$0xff] %v74
    %v76 = vld [vmem:[#allocation4 + $0x8] sm:$0xff]
    %v77 = vxor.u32 %v76, 2147483648
    %v78 = vmul.f32 %v77, 1.442695
    %v79 = vpow.pop %v78
    %v80 = vadd.f32 %v79, 1.0
    %v81 = vrcp.pop %v80
    %v82 = vmul.f32 %v80, %v81
    %v83 = vsub.f32 1.0, %v82
    %v84 = vmul.f32 %v81, %v83
    %v85 = vadd.f32 %v81, %v84
    %vm86 = vweird.f32 %v80
    %vm87 = vweird.f32 %v81
    %vm88 = vmor %vm86, %vm87
    %v89 = vsel %vm88, %v81, %v85
    %v90 = vand.u32 2147483647, %v80
    %vm91 = vcmp.eq.f32.partialorder %v90, 8.507059e+37
    %v92 = vand.u32 %v80, 2147483648
    %v93 = vor.u32 1.1754944e-38, %v92
    %v94 = vsel %vm91, %v93, %v89
    %v95 = vmul.f32 1.0, %v94
    %v96 = vld [vmem:[#allocation6 + $0x8] sm:$0xff]
    %v97 = vld [vmem:[#allocation2] sm:$0xff]
    %v98 = vmul.f32 %v95, %v96
    %v99 = vadd.f32 %v97, %v98
    %100 = vst [vmem:[#allocation2] sm:$0xff] %v99
    %v101 = vld [vmem:[#allocation3] sm:$0xff]
    %v102 = vadd.f32 %v95, %v96
    %v103 = vadd.f32 %v101, %v102
    %104 = vst [vmem:[#allocation3] sm:$0xff] %v103
    // Predicated region
    $region22: #{tpu_custom_call.1} parent=1 // pred_check
      %p105 = pneg %p41
    $region23: #{tpu_custom_call.1} parent=1 // pred_check_branch
      %107 = sbr.rel (%p105) target = $region25
    $region24: #{tpu_custom_call.1} parent=1 // pred_region
      %v108 = vld [vmem:[#allocation2] sm:$0xff]
      %109 = vadd.xlane.f32.xlu0 %v108
      %v110 = vpop.xlane.xlu0 %109
      %vm111 = vcmask 7168
      %112 = vst.msk [vmem:[%s2] sm:$0xff] %vm111, %v110
      %v113 = vld [vmem:[#allocation3] sm:$0xff]
      %114 = vadd.xlane.f32.xlu0 %v113
      %v115 = vpop.xlane.xlu0 %114
      %116 = vst.msk [vmem:[%s3] sm:$0xff] %vm111, %v115
    $region25: #{tpu_custom_call.1} parent=1 // pred_fallthru
      _
    // Predicated region
    $region26: #{tpu_custom_call.1} parent=1 // pred_check
      _
    $region27: #{tpu_custom_call.1} parent=1 // pred_check_branch
      %118 = sbr.rel (0) target = $region29
    $region28: #{tpu_custom_call.1} parent=1 // pred_region
      _
    $region29: #{tpu_custom_call.1} parent=1 // pred_fallthru
      _
    // Predicated region
    $region30: #{tpu_custom_call.1} parent=1 // pred_check
      _
    $region31: #{tpu_custom_call.1} parent=1 // pred_check_branch
      %120 = sbr.rel (0) target = $region33
    $region32: #{tpu_custom_call.1} parent=1 // pred_region
      _
    $region33: #{tpu_custom_call.1} parent=1 // pred_fallthru
      _
    // Predicated region
    $region34: #{tpu_custom_call.1} parent=1 // pred_check
      _
    $region35: #{tpu_custom_call.1} parent=1 // pred_check_branch
      %122 = sbr.rel (0) target = $region37
    $region36: #{tpu_custom_call.1} parent=1 // pred_region
      _
    $region37: #{tpu_custom_call.1} parent=1 // pred_fallthru
      _
    // Predicated region
    $region38: #{tpu_custom_call.1} parent=1 // pred_check
      _
    $region39: #{tpu_custom_call.1} parent=1 // pred_check_branch
      %124 = sbr.rel (0) target = $region41
    $region40: #{tpu_custom_call.1} parent=1 // pred_region
      _
    $region41: #{tpu_custom_call.1} parent=1 // pred_fallthru
      _
    %125 = vsyncpa [#allocation5], 1
    %126 = vsyncpa [#allocation7], 1

</llo_original>
